<compile_context>
chip_gen: v5e
topology: v5e:2x2
jax: 0.10.0
libtpu: 0.0.40
codegen_flags: <defaults>
</compile_context>

<pallas_src>
import jax
import jax.numpy as jnp
import numpy as np
from jax.experimental import pallas as pl
from jax.experimental.pallas import tpu as pltpu

INPUT_DIM = 32    # args.input_dim
HIDDEN_DIM = 32   # args.hidden_dim
Z_DIM = 4         # args.z_dim
BATCH = 8

_D, _H, _Z = INPUT_DIM, HIDDEN_DIM, Z_DIM
_ENC_W = _Z * _H          # 128 : fused encoder width (= rows of W_h)
_HEAD_W = 2 * _Z * _Z     # 32  : fused [mu | logvar] head width


def b2sc_kernel(x_ref, wx_ref, whd_ref, aux_ref, out_ref):
    B = x_ref.shape[0]
    x = x_ref[...]                                    # (B, 32)
    wx = wx_ref[...]                                  # (32, 256)
    whd = whd_ref[...]                                # (128, 64)
    aux = aux_ref[...]                                # (16, 256)

    # ---- encode: all z_dim branches + gmm projection in ONE matmul ----
    b_x = aux[0:1, :]                                 # (1, 256)
    y = jnp.dot(x, wx, preferred_element_type=jnp.float32) + b_x          # (B, 256)
    h_all = jnp.maximum(y[:, 0:_ENC_W], 0.0)          # (B, 128) ReLU(fcs[i](x)); dropout=id
    gmm = y[:, _ENC_W:_ENC_W + _Z]                    # (B, 4)   fc_gmm_weights(x)

    # ---- all mu / logvar heads in ONE block-diagonal matmul ----
    w_h = whd[:, 0:_HEAD_W]                           # (128, 32)
    b_h = aux[1:2, 0:_HEAD_W]                         # (1, 32)
    heads = jnp.dot(h_all, w_h, preferred_element_type=jnp.float32) + b_h  # (B, 32)
    # heads[:, i*4:(i+1)*4]        = fc_means[i](h_i)
    # heads[:, 16+i*4:16+(i+1)*4]  = fc_logvars[i](h_i)

    # ---- selected_neuron (None path): mean over batch, clamp, multinomial(1) ----
    gmm_mean = jnp.mean(gmm, axis=0, keepdims=True)   # (1, 4)
    pos = gmm_mean > 0.0
    pos_min = jnp.min(jnp.where(pos, gmm_mean, 1e30), axis=1, keepdims=True)  # (1,1)
    any_pos = jnp.max(jnp.where(pos, 1.0, 0.0), axis=1, keepdims=True) > 0.0  # (1,1)
    min_positive = jnp.where(any_pos, pos_min, 1e-3)
    clamped = jnp.maximum(gmm_mean, min_positive)     # (1, 4)

    # inverse-CDF draw (z_dim=4, unrolled cumulative sums)
    u = aux[1:2, 160:161]                             # (1,1) uniform in [0,1)
    c0 = clamped[:, 0:1]
    c1 = c0 + clamped[:, 1:2]
    c2 = c1 + clamped[:, 2:3]
    total = c2 + clamped[:, 3:4]
    thr = u * total
    sel = ((c0 < thr).astype(jnp.float32)
           + (c1 < thr).astype(jnp.float32)
           + (c2 < thr).astype(jnp.float32))          # (1,1) value in {0,1,2,3}

    # ---- pick mu / logvar of the selected branch (static unroll, z_dim=4) ----
    def pick(base):
        v = heads[:, base:base + _Z]
        for i in range(1, _Z):
            v = jnp.where(sel == float(i),
                          heads[:, base + i * _Z:base + (i + 1) * _Z], v)
        return v

    mu_sel = pick(0)                                  # (B, 4)
    lv_sel = pick(_Z * _Z)                            # (B, 4)

    # ---- reparameterize ----
    lv_min = jnp.min(jnp.min(lv_sel, axis=1, keepdims=True), axis=0, keepdims=True)
    lv_max = jnp.max(jnp.max(lv_sel, axis=1, keepdims=True), axis=0, keepdims=True)
    variability = aux[1:2, 161:162]                   # (1,1)
    scaled = variability * (lv_sel - lv_min) / (lv_max - lv_min)
    std = jnp.exp(scaled)                             # EUP
    eps = aux[2:2 + B, 0:_Z]                          # (B, 4) randn_like(std) stand-in
    gmm_sum = jnp.sum(gmm_mean, axis=1, keepdims=True)
    z = (mu_sel + eps * std) * gmm_sum                # (B, 4)

    # ---- decode (dropout = identity in eval mode) ----
    w_d1 = whd[0:_Z, _H:2 * _H]                       # (4, 32)
    w_d2 = whd[_H:2 * _H, _H:2 * _H]                  # (32, 32)
    w_d3 = whd[2 * _H:3 * _H, _H:2 * _H]              # (32, 32)
    w_ct = whd[3 * _H:4 * _H, _H:2 * _H]              # (32, 32)
    b_d1 = aux[1:2, 32:64]
    b_d2 = aux[1:2, 64:96]
    b_d3 = aux[1:2, 96:128]
    b_ct = aux[1:2, 128:160]

    h1 = jnp.maximum(jnp.dot(z, w_d1, preferred_element_type=jnp.float32) + b_d1, 0.0)
    h2 = jnp.maximum(jnp.dot(h1, w_d2, preferred_element_type=jnp.float32) + b_d2, 0.0)
    h3 = jnp.maximum(jnp.dot(h2, w_d3, preferred_element_type=jnp.float32) + b_d3, 0.0)
    recon = jnp.dot(h3, w_ct, preferred_element_type=jnp.float32) + b_ct   # (B, 32)

    # ---- outputs: one lane-dense 128-wide row = [recon.sum(0) | sel | 0-pad] ----
    recon_sum = jnp.sum(recon, axis=0, keepdims=True)                      # (1, 32)
    out_ref[...] = jnp.zeros((1, 128), jnp.float32)
    out_ref[0:1, 0:_D] = recon_sum
    out_ref[0:1, _D:_D + 1] = sel


def b2sc_forward(x, w_x, w_hd, aux):
    """Runs the fused kernel; returns (recon_x.sum(0), selected_neuron)."""
    vmem = pl.BlockSpec(memory_space=pltpu.MemorySpace.VMEM)
    out = pl.pallas_call(
        b2sc_kernel,
        out_shape=jax.ShapeDtypeStruct((1, 128), jnp.float32),
        in_specs=[vmem] * 4,
        out_specs=vmem,
    )(x, w_x, w_hd, aux)
    recon_sum = out[0, :INPUT_DIM]
    selected_neuron = out[0, INPUT_DIM].astype(jnp.int32)
    return recon_sum, selected_neuron


def init_params(key):
    """Synthetic Linear params, stored as (in, out) so y = x @ W + b."""
    ks = jax.random.split(key, 16)

    def init(k, shape, scale=0.1):
        return (scale * jax.random.normal(k, shape)).astype(jnp.float32)

    return {
        "w_fc": init(ks[0], (_Z, _D, _H)),  "b_fc": init(ks[1], (_Z, _H)),
        "w_mu": init(ks[2], (_Z, _H, _Z)),  "b_mu": init(ks[3], (_Z, _Z)),
        "w_lv": init(ks[4], (_Z, _H, _Z)),  "b_lv": init(ks[5], (_Z, _Z)),
        "w_gmm": init(ks[6], (_D, _Z)),     "b_gmm": init(ks[7], (_Z,)),
        "w_d1": init(ks[8], (_Z, _H)),      "b_d1": init(ks[9], (_H,)),
        "w_d2": init(ks[10], (_H, _H)),     "b_d2": init(ks[11], (_H,)),
        "w_d3": init(ks[12], (_H, _H)),     "b_d3": init(ks[13], (_H,)),
        "w_ct": init(ks[14], (_H, _D)),     "b_ct": init(ks[15], (_D,)),
    }


def pack_operands(params, eps, u, variability):
    """Host-side packing of all weights/biases/eps/scalars into 3 f32 slabs."""
    B = eps.shape[0]
    # W_x : (32, 256) = [fc_0 | fc_1 | fc_2 | fc_3 | w_gmm | 0-pad]
    w_x = jnp.zeros((_D, 256), jnp.float32)
    for i in range(_Z):
        w_x = w_x.at[:, i * _H:(i + 1) * _H].set(params["w_fc"][i])
    w_x = w_x.at[:, _ENC_W:_ENC_W + _Z].set(params["w_gmm"])

    # W_hd : (128, 64); cols 0:32 block-diag [mu|logvar] heads, cols 32:64 decoder stack
    w_hd = jnp.zeros((_ENC_W, 2 * _H), jnp.float32)
    for i in range(_Z):
        w_hd = w_hd.at[i * _H:(i + 1) * _H, i * _Z:(i + 1) * _Z].set(params["w_mu"][i])
        w_hd = w_hd.at[i * _H:(i + 1) * _H,
                       _Z * _Z + i * _Z:_Z * _Z + (i + 1) * _Z].set(params["w_lv"][i])
    w_hd = w_hd.at[0:_Z, _H:2 * _H].set(params["w_d1"])
    w_hd = w_hd.at[_H:2 * _H, _H:2 * _H].set(params["w_d2"])
    w_hd = w_hd.at[2 * _H:3 * _H, _H:2 * _H].set(params["w_d3"])
    w_hd = w_hd.at[3 * _H:4 * _H, _H:2 * _H].set(params["w_ct"])

    # aux : (16, 256) — biases, eps, uniform draw, variability
    aux = jnp.zeros((16, 256), jnp.float32)
    aux = aux.at[0, 0:_ENC_W].set(params["b_fc"].reshape(-1))
    aux = aux.at[0, _ENC_W:_ENC_W + _Z].set(params["b_gmm"])
    aux = aux.at[1, 0:_Z * _Z].set(params["b_mu"].reshape(-1))
    aux = aux.at[1, _Z * _Z:2 * _Z * _Z].set(params["b_lv"].reshape(-1))
    aux = aux.at[1, 32:64].set(params["b_d1"])
    aux = aux.at[1, 64:96].set(params["b_d2"])
    aux = aux.at[1, 96:128].set(params["b_d3"])
    aux = aux.at[1, 128:160].set(params["b_ct"])
    aux = aux.at[1, 160].set(u)
    aux = aux.at[1, 161].set(variability)
    aux = aux.at[2:2 + B, 0:_Z].set(eps)
    return w_x, w_hd, aux


def b2sc_reference(x, params, eps, u, variability=1.0):
    """Pure-JAX mirror of B2SC.forward (eval mode, selected_neuron=None path)."""
    mus, logvars = [], []
    for i in range(_Z):
        h = jnp.maximum(x @ params["w_fc"][i] + params["b_fc"][i], 0.0)
        mus.append(h @ params["w_mu"][i] + params["b_mu"][i])
        logvars.append(h @ params["w_lv"][i] + params["b_lv"][i])
    gmm = x @ params["w_gmm"] + params["b_gmm"]
    gmm_mean = gmm.mean(axis=0)
    pos = gmm_mean > 0.0
    pos_min = jnp.min(jnp.where(pos, gmm_mean, 1e30))
    min_positive = jnp.where(jnp.any(pos), pos_min, 1e-3)
    clamped = jnp.maximum(gmm_mean, min_positive)
    cdf = jnp.cumsum(clamped)
    thr = u * cdf[-1]
    sel = jnp.sum((cdf[:-1] < thr).astype(jnp.int32))
    mu = jnp.stack(mus)[sel]
    lv = jnp.stack(logvars)[sel]
    scaled = variability * (lv - lv.min()) / (lv.max() - lv.min())
    std = jnp.exp(scaled)
    z = (mu + eps * std) * jnp.sum(gmm_mean)   # (B,Z,1)*(Z,) then sum(-1) == this
    h1 = jnp.maximum(z @ params["w_d1"] + params["b_d1"], 0.0)
    h2 = jnp.maximum(h1 @ params["w_d2"] + params["b_d2"], 0.0)
    h3 = jnp.maximum(h2 @ params["w_d3"] + params["b_d3"], 0.0)
    recon = h3 @ params["w_ct"] + params["b_ct"]
    return recon.sum(axis=0), sel


if __name__ == "__main__":
    key = jax.random.PRNGKey(0)
    k_par, k_x, k_eps, k_u = jax.random.split(key, 4)
    params = init_params(k_par)

    # x.view(-1, input_dim) in the reference -> pass x already as (B, input_dim)
    x = jax.random.normal(k_x, (BATCH, INPUT_DIM), dtype=jnp.float32)
    # deterministic stand-ins for torch.randn_like and torch.multinomial's draw
    eps = jax.random.normal(k_eps, (BATCH, Z_DIM), dtype=jnp.float32)
    u = jax.random.uniform(k_u, (), dtype=jnp.float32)
    variability = jnp.float32(1.0)

    w_x, w_hd, aux = pack_operands(params, eps, u, variability)
    recon_sum, selected_neuron = b2sc_forward(x, w_x, w_hd, aux)
    jax.block_until_ready((recon_sum, selected_neuron))

    ref_recon, ref_sel = b2sc_reference(x, params, eps, u, 1.0)
    np.testing.assert_allclose(np.asarray(recon_sum), np.asarray(ref_recon),
                               rtol=1e-3, atol=1e-3)
    assert int(selected_neuron) == int(ref_sel)
    print("KERNEL_OK")
</pallas_src>

<mosaic_0001>
module attributes {stable_mosaic.version = 11 : i64} {
  func.func @b2sc_kernel(%arg0: memref<8x32xf32, #tpu.memory_space<vmem>>, %arg1: memref<32x256xf32, #tpu.memory_space<vmem>>, %arg2: memref<128x64xf32, #tpu.memory_space<vmem>>, %arg3: memref<16x256xf32, #tpu.memory_space<vmem>>, %arg4: memref<1x128xf32, #tpu.memory_space<vmem>>) attributes {dimension_semantics = [], scalar_prefetch = 0 : i64, scratch_operands = 0 : i64, tpu.core_type = #tpu.core_type<tc>} {
    %c0 = arith.constant 0 : index
    %c0_0 = arith.constant 0 : index
    %0 = vector.load %arg0[%c0, %c0_0] : memref<8x32xf32, #tpu.memory_space<vmem>>, vector<8x32xf32>
    %c0_1 = arith.constant 0 : index
    %c0_2 = arith.constant 0 : index
    %1 = vector.load %arg1[%c0_1, %c0_2] : memref<32x256xf32, #tpu.memory_space<vmem>>, vector<32x256xf32>
    %c0_3 = arith.constant 0 : index
    %c0_4 = arith.constant 0 : index
    %2 = vector.load %arg2[%c0_3, %c0_4] : memref<128x64xf32, #tpu.memory_space<vmem>>, vector<128x64xf32>
    %c0_5 = arith.constant 0 : index
    %c0_6 = arith.constant 0 : index
    %3 = vector.load %arg3[%c0_5, %c0_6] : memref<16x256xf32, #tpu.memory_space<vmem>>, vector<16x256xf32>
    %4 = vector.extract_strided_slice %3 {offsets = [0, 0], sizes = [1, 256], strides = [1, 1]} : vector<16x256xf32> to vector<1x256xf32>
    %cst = arith.constant dense<0.000000e+00> : vector<8x256xf32>
    %5 = tpu.matmul %0, %1, %cst {dimension_numbers = #tpu.dot_dimension_numbers<[1], [0], [0], [1], [0, 0, 1, 1], [], []>} : vector<8x32xf32>, vector<32x256xf32>, vector<8x256xf32> -> vector<8x256xf32>
    %6 = vector.broadcast %4 : vector<1x256xf32> to vector<8x256xf32>
    %7 = arith.addf %5, %6 : vector<8x256xf32>
    %8 = vector.extract_strided_slice %7 {offsets = [0, 0], sizes = [8, 128], strides = [1, 1]} : vector<8x256xf32> to vector<8x128xf32>
    %cst_7 = arith.constant 0.000000e+00 : f32
    %9 = vector.broadcast %cst_7 : f32 to vector<8x128xf32>
    %10 = arith.maximumf %8, %9 : vector<8x128xf32>
    %11 = vector.extract_strided_slice %7 {offsets = [0, 128], sizes = [8, 4], strides = [1, 1]} : vector<8x256xf32> to vector<8x4xf32>
    %12 = vector.extract_strided_slice %2 {offsets = [0, 0], sizes = [128, 32], strides = [1, 1]} : vector<128x64xf32> to vector<128x32xf32>
    %13 = vector.extract_strided_slice %3 {offsets = [1, 0], sizes = [1, 32], strides = [1, 1]} : vector<16x256xf32> to vector<1x32xf32>
    %cst_8 = arith.constant dense<0.000000e+00> : vector<8x32xf32>
    %14 = tpu.matmul %10, %12, %cst_8 {dimension_numbers = #tpu.dot_dimension_numbers<[1], [0], [0], [1], [0, 0, 1, 1], [], []>} : vector<8x128xf32>, vector<128x32xf32>, vector<8x32xf32> -> vector<8x32xf32>
    %15 = vector.broadcast %13 : vector<1x32xf32> to vector<8x32xf32>
    %16 = arith.addf %14, %15 : vector<8x32xf32>
    %cst_9 = arith.constant dense<0.000000e+00> : vector<4xf32>
    %17 = vector.multi_reduction <add>, %11, %cst_9 [0] : vector<8x4xf32> to vector<4xf32>
    %18 = vector.shape_cast %17 : vector<4xf32> to vector<1x4xf32>
    %cst_10 = arith.constant 8.000000e+00 : f32
    %19 = vector.broadcast %cst_10 : f32 to vector<1x4xf32>
    %20 = arith.divf %18, %19 : vector<1x4xf32>
    %cst_11 = arith.constant 0.000000e+00 : f32
    %21 = vector.broadcast %cst_11 : f32 to vector<1x4xf32>
    %22 = arith.cmpf ogt, %20, %21 : vector<1x4xf32>
    %cst_12 = arith.constant 1.000000e+30 : f32
    %23 = vector.broadcast %cst_12 : f32 to vector<1x4xf32>
    %24 = arith.select %22, %20, %23 : vector<1x4xi1>, vector<1x4xf32>
    %cst_13 = arith.constant dense<0x7F800000> : vector<1xf32>
    %25 = vector.multi_reduction <minimumf>, %24, %cst_13 [1] : vector<1x4xf32> to vector<1xf32>
    %26 = vector.shape_cast %25 : vector<1xf32> to vector<1x1xf32>
    %cst_14 = arith.constant 1.000000e+00 : f32
    %cst_15 = arith.constant 0.000000e+00 : f32
    %27 = vector.broadcast %cst_14 : f32 to vector<1x4xf32>
    %28 = vector.broadcast %cst_15 : f32 to vector<1x4xf32>
    %29 = arith.select %22, %27, %28 : vector<1x4xi1>, vector<1x4xf32>
    %cst_16 = arith.constant dense<0xFF800000> : vector<1xf32>
    %30 = vector.multi_reduction <maximumf>, %29, %cst_16 [1] : vector<1x4xf32> to vector<1xf32>
    %31 = vector.shape_cast %30 : vector<1xf32> to vector<1x1xf32>
    %cst_17 = arith.constant 0.000000e+00 : f32
    %32 = vector.broadcast %cst_17 : f32 to vector<1x1xf32>
    %33 = arith.cmpf ogt, %31, %32 : vector<1x1xf32>
    %cst_18 = arith.constant 1.000000e-03 : f32
    %34 = vector.broadcast %cst_18 : f32 to vector<1x1xf32>
    %35 = arith.select %33, %26, %34 : vector<1x1xi1>, vector<1x1xf32>
    %36 = vector.broadcast %35 : vector<1x1xf32> to vector<1x4xf32>
    %37 = arith.maximumf %20, %36 : vector<1x4xf32>
    %38 = vector.extract_strided_slice %3 {offsets = [1, 160], sizes = [1, 1], strides = [1, 1]} : vector<16x256xf32> to vector<1x1xf32>
    %39 = vector.extract_strided_slice %37 {offsets = [0, 0], sizes = [1, 1], strides = [1, 1]} : vector<1x4xf32> to vector<1x1xf32>
    %40 = vector.extract_strided_slice %37 {offsets = [0, 1], sizes = [1, 1], strides = [1, 1]} : vector<1x4xf32> to vector<1x1xf32>
    %41 = arith.addf %39, %40 : vector<1x1xf32>
    %42 = vector.extract_strided_slice %37 {offsets = [0, 2], sizes = [1, 1], strides = [1, 1]} : vector<1x4xf32> to vector<1x1xf32>
    %43 = arith.addf %41, %42 : vector<1x1xf32>
    %44 = vector.extract_strided_slice %37 {offsets = [0, 3], sizes = [1, 1], strides = [1, 1]} : vector<1x4xf32> to vector<1x1xf32>
    %45 = arith.addf %43, %44 : vector<1x1xf32>
    %46 = arith.mulf %38, %45 : vector<1x1xf32>
    %47 = arith.cmpf olt, %39, %46 : vector<1x1xf32>
    %48 = arith.extui %47 : vector<1x1xi1> to vector<1x1xi32>
    %49 = arith.sitofp %48 : vector<1x1xi32> to vector<1x1xf32>
    %50 = arith.cmpf olt, %41, %46 : vector<1x1xf32>
    %51 = arith.extui %50 : vector<1x1xi1> to vector<1x1xi32>
    %52 = arith.sitofp %51 : vector<1x1xi32> to vector<1x1xf32>
    %53 = arith.addf %49, %52 : vector<1x1xf32>
    %54 = arith.cmpf olt, %43, %46 : vector<1x1xf32>
    %55 = arith.extui %54 : vector<1x1xi1> to vector<1x1xi32>
    %56 = arith.sitofp %55 : vector<1x1xi32> to vector<1x1xf32>
    %57 = arith.addf %53, %56 : vector<1x1xf32>
    %58 = vector.extract_strided_slice %16 {offsets = [0, 0], sizes = [8, 4], strides = [1, 1]} : vector<8x32xf32> to vector<8x4xf32>
    %cst_19 = arith.constant 1.000000e+00 : f32
    %59 = vector.broadcast %cst_19 : f32 to vector<1x1xf32>
    %60 = arith.cmpf oeq, %57, %59 : vector<1x1xf32>
    %61 = vector.extract_strided_slice %16 {offsets = [0, 4], sizes = [8, 4], strides = [1, 1]} : vector<8x32xf32> to vector<8x4xf32>
    %62 = vector.shape_cast %60 : vector<1x1xi1> to vector<1x1xi1>
    %63 = vector.broadcast %62 : vector<1x1xi1> to vector<8x4xi1>
    %64 = arith.select %63, %61, %58 : vector<8x4xi1>, vector<8x4xf32>
    %cst_20 = arith.constant 2.000000e+00 : f32
    %65 = vector.broadcast %cst_20 : f32 to vector<1x1xf32>
    %66 = arith.cmpf oeq, %57, %65 : vector<1x1xf32>
    %67 = vector.extract_strided_slice %16 {offsets = [0, 8], sizes = [8, 4], strides = [1, 1]} : vector<8x32xf32> to vector<8x4xf32>
    %68 = vector.shape_cast %66 : vector<1x1xi1> to vector<1x1xi1>
    %69 = vector.broadcast %68 : vector<1x1xi1> to vector<8x4xi1>
    %70 = arith.select %69, %67, %64 : vector<8x4xi1>, vector<8x4xf32>
    %cst_21 = arith.constant 3.000000e+00 : f32
    %71 = vector.broadcast %cst_21 : f32 to vector<1x1xf32>
    %72 = arith.cmpf oeq, %57, %71 : vector<1x1xf32>
    %73 = vector.extract_strided_slice %16 {offsets = [0, 12], sizes = [8, 4], strides = [1, 1]} : vector<8x32xf32> to vector<8x4xf32>
    %74 = vector.shape_cast %72 : vector<1x1xi1> to vector<1x1xi1>
    %75 = vector.broadcast %74 : vector<1x1xi1> to vector<8x4xi1>
    %76 = arith.select %75, %73, %70 : vector<8x4xi1>, vector<8x4xf32>
    %77 = vector.extract_strided_slice %16 {offsets = [0, 16], sizes = [8, 4], strides = [1, 1]} : vector<8x32xf32> to vector<8x4xf32>
    %cst_22 = arith.constant 1.000000e+00 : f32
    %78 = vector.broadcast %cst_22 : f32 to vector<1x1xf32>
    %79 = arith.cmpf oeq, %57, %78 : vector<1x1xf32>
    %80 = vector.extract_strided_slice %16 {offsets = [0, 20], sizes = [8, 4], strides = [1, 1]} : vector<8x32xf32> to vector<8x4xf32>
    %81 = vector.shape_cast %79 : vector<1x1xi1> to vector<1x1xi1>
    %82 = vector.broadcast %81 : vector<1x1xi1> to vector<8x4xi1>
    %83 = arith.select %82, %80, %77 : vector<8x4xi1>, vector<8x4xf32>
    %cst_23 = arith.constant 2.000000e+00 : f32
    %84 = vector.broadcast %cst_23 : f32 to vector<1x1xf32>
    %85 = arith.cmpf oeq, %57, %84 : vector<1x1xf32>
    %86 = vector.extract_strided_slice %16 {offsets = [0, 24], sizes = [8, 4], strides = [1, 1]} : vector<8x32xf32> to vector<8x4xf32>
    %87 = vector.shape_cast %85 : vector<1x1xi1> to vector<1x1xi1>
    %88 = vector.broadcast %87 : vector<1x1xi1> to vector<8x4xi1>
    %89 = arith.select %88, %86, %83 : vector<8x4xi1>, vector<8x4xf32>
    %cst_24 = arith.constant 3.000000e+00 : f32
    %90 = vector.broadcast %cst_24 : f32 to vector<1x1xf32>
    %91 = arith.cmpf oeq, %57, %90 : vector<1x1xf32>
    %92 = vector.extract_strided_slice %16 {offsets = [0, 28], sizes = [8, 4], strides = [1, 1]} : vector<8x32xf32> to vector<8x4xf32>
    %93 = vector.shape_cast %91 : vector<1x1xi1> to vector<1x1xi1>
    %94 = vector.broadcast %93 : vector<1x1xi1> to vector<8x4xi1>
    %95 = arith.select %94, %92, %89 : vector<8x4xi1>, vector<8x4xf32>
    %cst_25 = arith.constant dense<0x7F800000> : vector<8xf32>
    %96 = vector.multi_reduction <minimumf>, %95, %cst_25 [1] : vector<8x4xf32> to vector<8xf32>
    %97 = vector.shape_cast %96 : vector<8xf32> to vector<8x1xf32>
    %cst_26 = arith.constant dense<0x7F800000> : vector<1xf32>
    %98 = vector.multi_reduction <minimumf>, %97, %cst_26 [0] : vector<8x1xf32> to vector<1xf32>
    %99 = vector.shape_cast %98 : vector<1xf32> to vector<1x1xf32>
    %cst_27 = arith.constant dense<0xFF800000> : vector<8xf32>
    %100 = vector.multi_reduction <maximumf>, %95, %cst_27 [1] : vector<8x4xf32> to vector<8xf32>
    %101 = vector.shape_cast %100 : vector<8xf32> to vector<8x1xf32>
    %cst_28 = arith.constant dense<0xFF800000> : vector<1xf32>
    %102 = vector.multi_reduction <maximumf>, %101, %cst_28 [0] : vector<8x1xf32> to vector<1xf32>
    %103 = vector.shape_cast %102 : vector<1xf32> to vector<1x1xf32>
    %104 = vector.extract_strided_slice %3 {offsets = [1, 161], sizes = [1, 1], strides = [1, 1]} : vector<16x256xf32> to vector<1x1xf32>
    %105 = vector.broadcast %99 : vector<1x1xf32> to vector<8x4xf32>
    %106 = arith.subf %95, %105 : vector<8x4xf32>
    %107 = vector.broadcast %104 : vector<1x1xf32> to vector<8x4xf32>
    %108 = arith.mulf %107, %106 : vector<8x4xf32>
    %109 = arith.subf %103, %99 : vector<1x1xf32>
    %110 = vector.broadcast %109 : vector<1x1xf32> to vector<8x4xf32>
    %111 = arith.divf %108, %110 : vector<8x4xf32>
    %112 = math.exp %111 : vector<8x4xf32>
    %113 = vector.extract_strided_slice %3 {offsets = [2, 0], sizes = [8, 4], strides = [1, 1]} : vector<16x256xf32> to vector<8x4xf32>
    %cst_29 = arith.constant dense<0.000000e+00> : vector<1xf32>
    %114 = vector.multi_reduction <add>, %20, %cst_29 [1] : vector<1x4xf32> to vector<1xf32>
    %115 = vector.shape_cast %114 : vector<1xf32> to vector<1x1xf32>
    %116 = arith.mulf %113, %112 : vector<8x4xf32>
    %117 = arith.addf %76, %116 : vector<8x4xf32>
    %118 = vector.broadcast %115 : vector<1x1xf32> to vector<8x4xf32>
    %119 = arith.mulf %117, %118 : vector<8x4xf32>
    %120 = vector.extract_strided_slice %2 {offsets = [0, 32], sizes = [4, 32], strides = [1, 1]} : vector<128x64xf32> to vector<4x32xf32>
    %121 = vector.extract_strided_slice %2 {offsets = [32, 32], sizes = [32, 32], strides = [1, 1]} : vector<128x64xf32> to vector<32x32xf32>
    %122 = vector.extract_strided_slice %2 {offsets = [64, 32], sizes = [32, 32], strides = [1, 1]} : vector<128x64xf32> to vector<32x32xf32>
    %123 = vector.extract_strided_slice %2 {offsets = [96, 32], sizes = [32, 32], strides = [1, 1]} : vector<128x64xf32> to vector<32x32xf32>
    %124 = vector.extract_strided_slice %3 {offsets = [1, 32], sizes = [1, 32], strides = [1, 1]} : vector<16x256xf32> to vector<1x32xf32>
    %125 = vector.extract_strided_slice %3 {offsets = [1, 64], sizes = [1, 32], strides = [1, 1]} : vector<16x256xf32> to vector<1x32xf32>
    %126 = vector.extract_strided_slice %3 {offsets = [1, 96], sizes = [1, 32], strides = [1, 1]} : vector<16x256xf32> to vector<1x32xf32>
    %127 = vector.extract_strided_slice %3 {offsets = [1, 128], sizes = [1, 32], strides = [1, 1]} : vector<16x256xf32> to vector<1x32xf32>
    %cst_30 = arith.constant dense<0.000000e+00> : vector<8x32xf32>
    %128 = tpu.matmul %119, %120, %cst_30 {dimension_numbers = #tpu.dot_dimension_numbers<[1], [0], [0], [1], [0, 0, 1, 1], [], []>} : vector<8x4xf32>, vector<4x32xf32>, vector<8x32xf32> -> vector<8x32xf32>
    %129 = vector.broadcast %124 : vector<1x32xf32> to vector<8x32xf32>
    %130 = arith.addf %128, %129 : vector<8x32xf32>
    %cst_31 = arith.constant 0.000000e+00 : f32
    %131 = vector.broadcast %cst_31 : f32 to vector<8x32xf32>
    %132 = arith.maximumf %130, %131 : vector<8x32xf32>
    %cst_32 = arith.constant dense<0.000000e+00> : vector<8x32xf32>
    %133 = tpu.matmul %132, %121, %cst_32 {dimension_numbers = #tpu.dot_dimension_numbers<[1], [0], [0], [1], [0, 0, 1, 1], [], []>} : vector<8x32xf32>, vector<32x32xf32>, vector<8x32xf32> -> vector<8x32xf32>
    %134 = vector.broadcast %125 : vector<1x32xf32> to vector<8x32xf32>
    %135 = arith.addf %133, %134 : vector<8x32xf32>
    %cst_33 = arith.constant 0.000000e+00 : f32
    %136 = vector.broadcast %cst_33 : f32 to vector<8x32xf32>
    %137 = arith.maximumf %135, %136 : vector<8x32xf32>
    %cst_34 = arith.constant dense<0.000000e+00> : vector<8x32xf32>
    %138 = tpu.matmul %137, %122, %cst_34 {dimension_numbers = #tpu.dot_dimension_numbers<[1], [0], [0], [1], [0, 0, 1, 1], [], []>} : vector<8x32xf32>, vector<32x32xf32>, vector<8x32xf32> -> vector<8x32xf32>
    %139 = vector.broadcast %126 : vector<1x32xf32> to vector<8x32xf32>
    %140 = arith.addf %138, %139 : vector<8x32xf32>
    %cst_35 = arith.constant 0.000000e+00 : f32
    %141 = vector.broadcast %cst_35 : f32 to vector<8x32xf32>
    %142 = arith.maximumf %140, %141 : vector<8x32xf32>
    %cst_36 = arith.constant dense<0.000000e+00> : vector<8x32xf32>
    %143 = tpu.matmul %142, %123, %cst_36 {dimension_numbers = #tpu.dot_dimension_numbers<[1], [0], [0], [1], [0, 0, 1, 1], [], []>} : vector<8x32xf32>, vector<32x32xf32>, vector<8x32xf32> -> vector<8x32xf32>
    %144 = vector.broadcast %127 : vector<1x32xf32> to vector<8x32xf32>
    %145 = arith.addf %143, %144 : vector<8x32xf32>
    %cst_37 = arith.constant dense<0.000000e+00> : vector<32xf32>
    %146 = vector.multi_reduction <add>, %145, %cst_37 [0] : vector<8x32xf32> to vector<32xf32>
    %147 = vector.shape_cast %146 : vector<32xf32> to vector<1x32xf32>
    %cst_38 = arith.constant 0.000000e+00 : f32
    %148 = vector.broadcast %cst_38 : f32 to vector<1x128xf32>
    %c0_39 = arith.constant 0 : index
    %c0_40 = arith.constant 0 : index
    %149 = vector.load %arg4[%c0_39, %c0_40] : memref<1x128xf32, #tpu.memory_space<vmem>>, vector<1x128xf32>
    tpu.vector_store %arg4[%c0_39, %c0_40], %148 {strides = array<i32>} : memref<1x128xf32, #tpu.memory_space<vmem>>, vector<1x128xf32>,
    %c0_41 = arith.constant 0 : index
    %c0_42 = arith.constant 0 : index
    %150 = vector.load %arg4[%c0_41, %c0_42] : memref<1x128xf32, #tpu.memory_space<vmem>>, vector<1x32xf32>
    tpu.vector_store %arg4[%c0_41, %c0_42], %147 {strides = array<i32>} : memref<1x128xf32, #tpu.memory_space<vmem>>, vector<1x32xf32>,
    %c0_43 = arith.constant 0 : index
    %c32 = arith.constant 32 : index
    %151 = vector.load %arg4[%c0_43, %c32] : memref<1x128xf32, #tpu.memory_space<vmem>>, vector<1x1xf32>
    tpu.vector_store %arg4[%c0_43, %c32], %57 {strides = array<i32>} : memref<1x128xf32, #tpu.memory_space<vmem>>, vector<1x1xf32>,
    return
  }
}

</mosaic_0001>

<llo_original>
// kernel: tpu_custom_call.1
$region0: #{tpu_custom_call.1}
  #allocation0 [shape = 'u32[]', space=smem, size = 0x4, offset = 0x4, fixed_abs, tag = 'smem constant byte address 0x4 - core index']
  #allocation1 [shape = 'u32[72,128]{1,0:T(1,128)}', space=vmem, size = 0x9000, scoped, tag = 'internal scratch']
  %s0 = inlined_call_operand.vmem [shape: f32[8,32], index: 0, kind: input, shape index: {}]
  %s1 = inlined_call_operand.vmem [shape: f32[32,256], index: 1, kind: input, shape index: {}]
  %s2 = inlined_call_operand.vmem [shape: f32[128,64], index: 2, kind: input, shape index: {}]
  %s3 = inlined_call_operand.vmem [shape: f32[16,256], index: 3, kind: input, shape index: {}]
  %s4 = inlined_call_operand.hbm [shape: f32[1,128], index: 4, kind: output, shape index: {}]
  %s5 = sld [smem:[#allocation0]]
  $region26: #{tpu_custom_call.1} parent=0
    _
  %s7 = ssub.s32 1, %s5
  %s8 = scalar_select 0, %s7, %s5
  $region1: #{tpu_custom_call.1} parent=0
    #allocation2 [shape = 'u8[512]{0}', space=vmem, size = 0x400, scoped, tag = 'output window, operand 0, single buffered']
    #allocation3 [shape = 's32[1]{0}', space=sflag, size = 0x4, scoped, tag = 'scoped memory for tpu_custom_call.1']
    %9 = vsyncpa [#allocation3], 0
    // Predicated region
    $region2: #{tpu_custom_call.1} parent=1 // pred_check
      _
    $region3: #{tpu_custom_call.1} parent=1 // pred_check_branch
      %11 = sbr.rel (0) target = $region5
    $region4: #{tpu_custom_call.1} parent=1 // pred_region
      _
    $region5: #{tpu_custom_call.1} parent=1 // pred_fallthru
      _
    // Predicated region
    $region6: #{tpu_custom_call.1} parent=1 // pred_check
      _
    $region7: #{tpu_custom_call.1} parent=1 // pred_check_branch
      %13 = sbr.rel (0) target = $region9
    $region8: #{tpu_custom_call.1} parent=1 // pred_region
      _
    $region9: #{tpu_custom_call.1} parent=1 // pred_fallthru
      _
    // Predicated region
    $region10: #{tpu_custom_call.1} parent=1 // pred_check
      _
    $region11: #{tpu_custom_call.1} parent=1 // pred_check_branch
      %15 = sbr.rel (0) target = $region13
    $region12: #{tpu_custom_call.1} parent=1 // pred_region
      _
    $region13: #{tpu_custom_call.1} parent=1 // pred_fallthru
      _
    // Predicated region
    $region14: #{tpu_custom_call.1} parent=1 // pred_check
      _
    $region15: #{tpu_custom_call.1} parent=1 // pred_check_branch
      %17 = sbr.rel (0) target = $region17
    $region16: #{tpu_custom_call.1} parent=1 // pred_region
      _
    $region17: #{tpu_custom_call.1} parent=1 // pred_fallthru
      _
    %v18 = vld [vmem:[%s0] sm:$0xff]
    %v19 = vld [vmem:[%s1] sm:$0xff]
    %v20 = vld [vmem:[%s1 + $0x8] sm:$0xff]
    %v21 = vld [vmem:[%s1 + $0x10] sm:$0xff]
    %v22 = vld [vmem:[%s1 + $0x18] sm:$0xff]
    %v23 = vld [vmem:[%s1 + $0x20] sm:$0xff]
    %v24 = vld [vmem:[%s1 + $0x28] sm:$0xff]
    %v25 = vld [vmem:[%s1 + $0x30] sm:$0xff]
    %v26 = vld [vmem:[%s1 + $0x38] sm:$0xff]
    %v27 = vld [vmem:[%s2] sm:$0xff]
    %v28 = vld [vmem:[%s2 + $0x8] sm:$0xff]
    %v29 = vld [vmem:[%s2 + $0x10] sm:$0xff]
    %v30 = vld [vmem:[%s2 + $0x18] sm:$0xff]
    %v31 = vld [vmem:[%s2 + $0x20] sm:$0xff]
    %v32 = vld [vmem:[%s2 + $0x28] sm:$0xff]
    %v33 = vld [vmem:[%s2 + $0x30] sm:$0xff]
    %v34 = vld [vmem:[%s2 + $0x38] sm:$0xff]
    %v35 = vld [vmem:[%s2 + $0x40] sm:$0xff]
    %v36 = vld [vmem:[%s2 + $0x48] sm:$0xff]
    %v37 = vld [vmem:[%s2 + $0x50] sm:$0xff]
    %v38 = vld [vmem:[%s2 + $0x58] sm:$0xff]
    %v39 = vld [vmem:[%s2 + $0x60] sm:$0xff]
    %v40 = vld [vmem:[%s2 + $0x68] sm:$0xff]
    %v41 = vld [vmem:[%s2 + $0x70] sm:$0xff]
    %v42 = vld [vmem:[%s2 + $0x78] sm:$0xff]
    %v43 = vld [vmem:[%s3] sm:$0xff]
    %v44 = vld [vmem:[%s3 + $0x8] sm:$0xff]
    %v45 = vld [vmem:[%s3 + $0x10] sm:$0xff]
    %v46 = vperm.slane %v43, 0
    %v47 = vperm.slane %v44, 0
    %vm48 = vcmask 261120
    %v50 = vsel %vm48, %v18, 0
    %52 = vmatpush.msra.mxu0 0.0
    %53 = vmatpush.msra.mxu0 0.0
    %54 = vmatpush.msra.mxu0 0.0
    %55 = vmatpush.msra.mxu0 0.0
    %56 = vmatpush.msra.mxu0 0.0
    %57 = vmatpush.msra.mxu0 0.0
    %58 = vmatpush.msra.mxu0 0.0
    %59 = vmatpush.msra.mxu0 0.0
    %60 = vmatpush.msra.mxu0 0.0
    %61 = vmatpush.msra.mxu0 0.0
    %62 = vmatpush.msra.mxu0 0.0
    %63 = vmatpush.msra.mxu0 0.0
    %64 = vmatpush.msra.mxu0 %v25
    %65 = vmatpush.msra.mxu0 %v23
    %66 = vmatpush.msra.mxu0 %v21
    %67 = vmatpush.msra.mxu0 %v19
    %68 = vmatmul.f32.gmra.mxu0 %v50
    %v69 = vpop.f32.mrf.mxu0
    %v70 = vadd.f32 %v46, %v69
    %71 = vdwg.mxu0
    %72 = vmatpush.msra.mxu0 0.0
    %73 = vmatpush.msra.mxu0 0.0
    %74 = vmatpush.msra.mxu0 0.0
    %75 = vmatpush.msra.mxu0 0.0
    %76 = vmatpush.msra.mxu0 0.0
    %77 = vmatpush.msra.mxu0 0.0
    %78 = vmatpush.msra.mxu0 0.0
    %79 = vmatpush.msra.mxu0 0.0
    %80 = vmatpush.msra.mxu0 0.0
    %81 = vmatpush.msra.mxu0 0.0
    %82 = vmatpush.msra.mxu0 0.0
    %83 = vmatpush.msra.mxu0 0.0
    %84 = vmatpush.msra.mxu0 %v26
    %85 = vmatpush.msra.mxu0 %v24
    %86 = vmatpush.msra.mxu0 %v22
    %87 = vmatpush.msra.mxu0 %v20
    %88 = vmatmul.f32.gmra.mxu0 %v50
    %v89 = vpop.f32.mrf.mxu0
    %v90 = vadd.f32 %v47, %v89
    %91 = vdwg.mxu0
    %v92 = vmax.f32 %v70, 0.0
    %v93 = vperm.slane %v43, 1
    %94 = vmatpush.msra.mxu0 %v42
    %95 = vmatpush.msra.mxu0 %v41
    %96 = vmatpush.msra.mxu0 %v40
    %97 = vmatpush.msra.mxu0 %v39
    %98 = vmatpush.msra.mxu0 %v38
    %99 = vmatpush.msra.mxu0 %v37
    %100 = vmatpush.msra.mxu0 %v36
    %101 = vmatpush.msra.mxu0 %v35
    %102 = vmatpush.msra.mxu0 %v34
    %103 = vmatpush.msra.mxu0 %v33
    %104 = vmatpush.msra.mxu0 %v32
    %105 = vmatpush.msra.mxu0 %v31
    %106 = vmatpush.msra.mxu0 %v30
    %107 = vmatpush.msra.mxu0 %v29
    %108 = vmatpush.msra.mxu0 %v28
    %109 = vmatpush.msra.mxu0 %v27
    %110 = vmatmul.f32.gmra.mxu0 %v92
    %v111 = vpop.f32.mrf.mxu0
    %v112 = vadd.f32 %v93, %v111
    %113 = vdwg.mxu0
    %vm114 = vcmask 31744
    %v115 = vsel %vm114, %v90, 0.0
    %v116 = vrot.slane %v115, 4
    %v117 = vadd.f32 %v115, %v116
    %v118 = vrot.slane %v117, 2
    %v119 = vadd.f32 %v117, %v118
    %v120 = vrot.slane %v119, 1
    %v121 = vadd.f32 %v119, %v120
    %v122 = vrcp.pop 8.0
    %v123 = vmul.f32 8.0, %v122
    %v124 = vsub.f32 1.0, %v123
    %v125 = vmul.f32 %v122, %v124
    %v126 = vadd.f32 %v122, %v125
    %vm127 = vweird.f32 %v122
    %v128 = vsel %vm127, %v122, %v126
    %v129 = vmul.f32 %v121, %v128
    %vm130 = vcmp.gt.f32.partialorder %v129, 0.0
    %v131 = vsel %vm130, %v129, 1e+30
    %v132 = vsel %vm114, %v131, inf
    %133 = vmin.xlane.f32.xlu0 %v132
    %v134 = vpop.xlane.xlu0 %133
    %v135 = vsel %vm130, 1.0, 0.0
    %v136 = vsel %vm114, %v135, -inf
    %137 = vmax.xlane.f32.xlu0 %v136
    %v138 = vpop.xlane.xlu0 %137
    %vm139 = vcmp.gt.f32.partialorder %v138, 0.0
    %v140 = vsel %vm139, %v134, 0.001
    %v141 = vmax.f32 %v129, %v140
    %143 = vrot.lane.b32.xlu0 %v141, 127
    %v144 = vpop.permute.xlu0 %143
    %v146 = vadd.f32 %v141, %v144
    %147 = vrot.lane.b32.xlu0 %v141, 126
    %v148 = vpop.permute.xlu0 %147
    %v150 = vadd.f32 %v146, %v148
    %151 = vrot.lane.b32.xlu0 %v141, 125
    %v152 = vpop.permute.xlu0 %151
    %v154 = vadd.f32 %v150, %v152
    %v156 = vrot.slane %v154, 7
    %157 = vrot.lane.b32.xlu0 %v156, 32
    %v158 = vpop.permute.xlu0 %157
    %v160 = vmul.f32 %v44, %v158
    %v162 = vrot.slane %v160, 1
    %163 = vrot.lane.b32.xlu0 %v162, 96
    %v164 = vpop.permute.xlu0 %163
    %vm166 = vcmp.lt.f32.partialorder %v141, %v164
    %v167 = vsel %vm166, 1, 0
    %v168 = vcvt.s32.f32 %v167
    %vm169 = vcmp.lt.f32.partialorder %v146, %v164
    %v170 = vsel %vm169, 1, 0
    %v171 = vcvt.s32.f32 %v170
    %v172 = vadd.f32 %v168, %v171
    %vm173 = vcmp.lt.f32.partialorder %v150, %v164
    %v174 = vsel %vm173, 1, 0
    %v175 = vcvt.s32.f32 %v174
    %v176 = vadd.f32 %v172, %v175
    %vm177 = vcmp.eq.f32.partialorder %v176, 1.0
    %v178 = vsel %vm177, 1, 0
    %s179 = vtos %v178
    %v180 = vstv %s179
    %vm181 = vcmp.eq.s32.totalorder %v180, 1
    %183 = vrot.lane.b32.xlu0 %v112, 4
    %v184 = vpop.permute.xlu0 %183
    %v186 = vsel %vm181, %v112, %v184
    %vm187 = vcmp.eq.f32.partialorder %v176, 2.0
    %v188 = vsel %vm187, 1, 0
    %s189 = vtos %v188
    %v190 = vstv %s189
    %vm191 = vcmp.eq.s32.totalorder %v190, 1
    %193 = vrot.lane.b32.xlu0 %v186, 4
    %v194 = vpop.permute.xlu0 %193
    %v196 = vsel %vm191, %v112, %v194
    %vm197 = vcmp.eq.f32.partialorder %v176, 3.0
    %v198 = vsel %vm197, 1, 0
    %s199 = vtos %v198
    %v200 = vstv %s199
    %vm201 = vcmp.eq.s32.totalorder %v200, 1
    %203 = vrot.lane.b32.xlu0 %v196, 4
    %v204 = vpop.permute.xlu0 %203
    %v206 = vsel %vm201, %v112, %v204
    %vm207 = vcmask 261344
    %v208 = vsel %vm207, %v206, inf
    %209 = vmin.xlane.f32.xlu0 %v208
    %v210 = vpop.xlane.xlu0 %209
    %v211 = vrot.slane %v210, 4
    %v212 = vmin.f32 %v210, %v211
    %v213 = vrot.slane %v212, 2
    %v214 = vmin.f32 %v212, %v213
    %v215 = vrot.slane %v214, 1
    %v216 = vmin.f32 %v214, %v215
    %v217 = vsel %vm207, %v206, -inf
    %218 = vmax.xlane.f32.xlu0 %v217
    %v219 = vpop.xlane.xlu0 %218
    %v220 = vrot.slane %v219, 4
    %v221 = vmax.f32 %v219, %v220
    %v222 = vrot.slane %v221, 2
    %v223 = vmax.f32 %v221, %v222
    %v224 = vrot.slane %v223, 1
    %v225 = vmax.f32 %v223, %v224
    %v226 = vsub.f32 %v206, %v216
    %v228 = vrot.slane %v44, 1
    %229 = vrot.lane.b32.xlu0 %v228, 95
    %v230 = vpop.permute.xlu0 %229
    %s231 = vtos %v230
    %v232 = vstv %s231
    %v234 = vmul.f32 %v232, %v226
    %v235 = vsub.f32 %v225, %v216
    %v236 = vrcp.pop %v235
    %v237 = vmul.f32 %v235, %v236
    %v238 = vsub.f32 1.0, %v237
    %v239 = vmul.f32 %v236, %v238
    %v240 = vadd.f32 %v236, %v239
    %vm241 = vweird.f32 %v235
    %vm242 = vweird.f32 %v236
    %vm243 = vmor %vm241, %vm242
    %v244 = vsel %vm243, %v236, %v240
    %v245 = vand.u32 2147483647, %v235
    %vm246 = vcmp.eq.f32.partialorder %v245, 8.507059e+37
    %v247 = vand.u32 %v235, 2147483648
    %v248 = vor.u32 1.1754944e-38, %v247
    %v249 = vsel %vm246, %v248, %v244
    %v250 = vmul.f32 %v234, %v249
    %v251 = vmul.f32 %v250, 1.442695
    %v252 = vpow.pop %v251
    %v253 = vsel %vm114, %v129, 0.0
    %254 = vadd.xlane.f32.xlu0 %v253
    %v255 = vpop.xlane.xlu0 %254
    %v257 = vrot.slane %v252, 6
    %258 = vrot.lane.b32.xlu0 %v257, 100
    %v259 = vpop.permute.xlu0 %258
    %v261 = vmul.f32 %v43, %v259
    %v262 = vmul.f32 %v45, %v259
    %vm265 = vcmask 1045504
    %v266 = vrot.slane %v261, 2
    %v267 = vrot.slane %v262, 2
    %v268 = vsel %vm265, %v266, %v267
    %269 = vrot.lane.b32.xlu0 %v268, 12
    %v270 = vpop.permute.xlu0 %269
    %v272 = vadd.f32 %v206, %v270
    %v273 = vmul.f32 %v272, %v255
    %275 = vrot.lane.b32.xlu0 %v273, 116
    %v276 = vpop.permute.xlu0 %275
    %278 = vrot.lane.b32.xlu0 %v27, 96
    %v279 = vpop.permute.xlu0 %278
    %281 = vrot.lane.b32.xlu0 %v93, 96
    %v282 = vpop.permute.xlu0 %281
    %v284 = vsel %vm114, %v276, 0
    %vm286 = vcmask 1043456
    %v287 = vsel %vm286, %v279, 0
    %289 = vmatpush.msra.mxu0 0.0
    %290 = vmatpush.msra.mxu0 0.0
    %291 = vmatpush.msra.mxu0 0.0
    %292 = vmatpush.msra.mxu0 0.0
    %293 = vmatpush.msra.mxu0 0.0
    %294 = vmatpush.msra.mxu0 0.0
    %295 = vmatpush.msra.mxu0 0.0
    %296 = vmatpush.msra.mxu0 0.0
    %297 = vmatpush.msra.mxu0 0.0
    %298 = vmatpush.msra.mxu0 0.0
    %299 = vmatpush.msra.mxu0 0.0
    %300 = vmatpush.msra.mxu0 0.0
    %301 = vmatpush.msra.mxu0 0.0
    %302 = vmatpush.msra.mxu0 0.0
    %303 = vmatpush.msra.mxu0 0.0
    %304 = vmatpush.msra.mxu0 %v287
    %305 = vmatmul.f32.gmra.mxu0 %v284
    %v306 = vpop.f32.mrf.mxu0
    %v307 = vadd.f32 %v282, %v306
    %308 = vdwg.mxu0
    %v309 = vmax.f32 %v307, 0.0
    %314 = vrot.lane.b32.xlu0 %v31, 96
    %v315 = vpop.permute.xlu0 %314
    %316 = vrot.lane.b32.xlu0 %v32, 96
    %v317 = vpop.permute.xlu0 %316
    %318 = vrot.lane.b32.xlu0 %v33, 96
    %v319 = vpop.permute.xlu0 %318
    %320 = vrot.lane.b32.xlu0 %v34, 96
    %v321 = vpop.permute.xlu0 %320
    %326 = vrot.lane.b32.xlu0 %v93, 64
    %v327 = vpop.permute.xlu0 %326
    %v330 = vsel %vm48, %v309, 0
    %332 = vmatpush.msra.mxu0 0.0
    %333 = vmatpush.msra.mxu0 0.0
    %334 = vmatpush.msra.mxu0 0.0
    %335 = vmatpush.msra.mxu0 0.0
    %336 = vmatpush.msra.mxu0 0.0
    %337 = vmatpush.msra.mxu0 0.0
    %338 = vmatpush.msra.mxu0 0.0
    %339 = vmatpush.msra.mxu0 0.0
    %340 = vmatpush.msra.mxu0 0.0
    %341 = vmatpush.msra.mxu0 0.0
    %342 = vmatpush.msra.mxu0 0.0
    %343 = vmatpush.msra.mxu0 0.0
    %344 = vmatpush.msra.mxu0 %v321
    %345 = vmatpush.msra.mxu0 %v319
    %346 = vmatpush.msra.mxu0 %v317
    %347 = vmatpush.msra.mxu0 %v315
    %348 = vmatmul.f32.gmra.mxu0 %v330
    %v349 = vpop.f32.mrf.mxu0
    %v350 = vadd.f32 %v327, %v349
    %351 = vdwg.mxu0
    %v352 = vmax.f32 %v350, 0.0
    %357 = vrot.lane.b32.xlu0 %v35, 96
    %v358 = vpop.permute.xlu0 %357
    %359 = vrot.lane.b32.xlu0 %v36, 96
    %v360 = vpop.permute.xlu0 %359
    %361 = vrot.lane.b32.xlu0 %v37, 96
    %v362 = vpop.permute.xlu0 %361
    %363 = vrot.lane.b32.xlu0 %v38, 96
    %v364 = vpop.permute.xlu0 %363
    %369 = vrot.lane.b32.xlu0 %v93, 32
    %v370 = vpop.permute.xlu0 %369
    %v373 = vsel %vm48, %v352, 0
    %375 = vmatpush.msra.mxu0 0.0
    %376 = vmatpush.msra.mxu0 0.0
    %377 = vmatpush.msra.mxu0 0.0
    %378 = vmatpush.msra.mxu0 0.0
    %379 = vmatpush.msra.mxu0 0.0
    %380 = vmatpush.msra.mxu0 0.0
    %381 = vmatpush.msra.mxu0 0.0
    %382 = vmatpush.msra.mxu0 0.0
    %383 = vmatpush.msra.mxu0 0.0
    %384 = vmatpush.msra.mxu0 0.0
    %385 = vmatpush.msra.mxu0 0.0
    %386 = vmatpush.msra.mxu0 0.0
    %387 = vmatpush.msra.mxu0 %v364
    %388 = vmatpush.msra.mxu0 %v362
    %389 = vmatpush.msra.mxu0 %v360
    %390 = vmatpush.msra.mxu0 %v358
    %391 = vmatmul.f32.gmra.mxu0 %v373
    %v392 = vpop.f32.mrf.mxu0
    %v393 = vadd.f32 %v370, %v392
    %394 = vdwg.mxu0
    %v395 = vmax.f32 %v393, 0.0
    %v396 = vperm.slane %v44, 1
    %401 = vrot.lane.b32.xlu0 %v39, 96
    %v402 = vpop.permute.xlu0 %401
    %403 = vrot.lane.b32.xlu0 %v40, 96
    %v404 = vpop.permute.xlu0 %403
    %405 = vrot.lane.b32.xlu0 %v41, 96
    %v406 = vpop.permute.xlu0 %405
    %407 = vrot.lane.b32.xlu0 %v42, 96
    %v408 = vpop.permute.xlu0 %407
    %v414 = vsel %vm48, %v395, 0
    %416 = vmatpush.msra.mxu0 0.0
    %417 = vmatpush.msra.mxu0 0.0
    %418 = vmatpush.msra.mxu0 0.0
    %419 = vmatpush.msra.mxu0 0.0
    %420 = vmatpush.msra.mxu0 0.0
    %421 = vmatpush.msra.mxu0 0.0
    %422 = vmatpush.msra.mxu0 0.0
    %423 = vmatpush.msra.mxu0 0.0
    %424 = vmatpush.msra.mxu0 0.0
    %425 = vmatpush.msra.mxu0 0.0
    %426 = vmatpush.msra.mxu0 0.0
    %427 = vmatpush.msra.mxu0 0.0
    %428 = vmatpush.msra.mxu0 %v408
    %429 = vmatpush.msra.mxu0 %v406
    %430 = vmatpush.msra.mxu0 %v404
    %431 = vmatpush.msra.mxu0 %v402
    %432 = vmatmul.f32.gmra.mxu0 %v414
    %v433 = vpop.f32.mrf.mxu0
    %v434 = vadd.f32 %v396, %v433
    %435 = vdwg.mxu0
    %v436 = vsel %vm48, %v434, 0.0
    %v437 = vrot.slane %v436, 4
    %v438 = vadd.f32 %v436, %v437
    %v439 = vrot.slane %v438, 2
    %v440 = vadd.f32 %v438, %v439
    %v441 = vrot.slane %v440, 1
    %v442 = vadd.f32 %v440, %v441
    %443 = vst [vmem:[#allocation2] sm:$0x1] 0.0
    %vm444 = vcmask 253952
    %445 = vst.msk [vmem:[#allocation2] sm:$0x1] %vm444, %v442
    %447 = vrot.lane.b32.xlu0 %v176, 32
    %v448 = vpop.permute.xlu0 %447
    %vm450 = vcmask 262400
    %451 = vst.msk [vmem:[#allocation2] sm:$0x1] %vm450, %v448
    // Predicated region
    $region18: #{tpu_custom_call.1} parent=1 // pred_check
      _
    $region19: #{tpu_custom_call.1} parent=1 // pred_check_branch
      %453 = sbr.rel (0) target = $region21
    $region20: #{tpu_custom_call.1} parent=1 // pred_region
      %455 = vsyncadd [#allocation3], 0
      %s457 = sshll.u32 [#allocation2], 4
      %s458 = int_to_ptr.vmem [resolvable:$true] %s457
      %s459 = sshll.u32 %s4, 4
      %s460 = int_to_ptr.hbm [resolvable:$true] %s459
      %462 = dma.vmem_to_hbm [thread:$0]  %s458, 16, %s460, [#allocation3]
    $region21: #{tpu_custom_call.1} parent=1 // pred_fallthru
      _
    // Predicated region
    $region22: #{tpu_custom_call.1} parent=1 // pred_check
      _
    $region23: #{tpu_custom_call.1} parent=1 // pred_check_branch
      %464 = sbr.rel (0) target = $region25
    $region24: #{tpu_custom_call.1} parent=1 // pred_region
      %466 = dma.done [#allocation3], 16
    $region25: #{tpu_custom_call.1} parent=1 // pred_fallthru
      _
    %467 = vsyncpa [#allocation3], 1

</llo_original>
